<compile_context>
chip_gen: v7x
topology: tpu7x:2x2x1
jax: 0.10.0
libtpu: 0.0.40
codegen_flags: <defaults>
</compile_context>

<pallas_src>
import functools

import jax
import jax.numpy as jnp
from jax.experimental import pallas as pl
from jax.experimental.pallas import tpu as pltpu

_VMEM_LIMIT = 32 * 1024 * 1024  # explicit scoped-VMEM budget, safe on v5e/v6e/v7x


def _pick_tile(n, target, multiple=8):
    """Largest divisor of n that is <= target and a multiple of `multiple`.
    Falls back to the full extent n (always a legal block dim)."""
    cands = [d for d in range(1, n + 1)
             if n % d == 0 and d <= target and d % multiple == 0]
    return max(cands) if cands else n


# ---------------------------------------------------------------------------
# 1) adaLN modulation: SiLU(c) @ W_ada + b_ada for the whole batch at once.
# ---------------------------------------------------------------------------
def _adaln_kernel(c_ref, w_ref, b_ref, o_ref):
    c = c_ref[...]                                       # (B, H) f32
    c_silu = c * jax.nn.sigmoid(c)
    o_ref[...] = (jnp.dot(c_silu, w_ref[...],
                          preferred_element_type=jnp.float32)
                  + b_ref[...]).astype(o_ref.dtype)


# ---------------------------------------------------------------------------
# 2) LayerNorm + modulate + Q/K/V projections (token-tiled).
#    mod_ref rows: [shift_msa, scale_msa, gate_msa]
# ---------------------------------------------------------------------------
def _qkv_kernel(x_ref, mod_ref, wq_ref, wk_ref, wv_ref,
                bq_ref, bk_ref, bv_ref, q_ref, k_ref, v_ref):
    x = x_ref[0]                                         # (TN, H) f32
    mod = mod_ref[0]                                     # (3, H) f32
    shift = mod[0:1, :]
    scale = mod[1:2, :]

    # LayerNorm (no affine, eps=1e-6, biased variance) in f32.
    mean = jnp.mean(x, axis=-1, keepdims=True)
    var = jnp.mean((x - mean) * (x - mean), axis=-1, keepdims=True)
    xn = (x - mean) * jax.lax.rsqrt(var + 1e-6)
    xm = xn * (1.0 + scale) + shift                      # (TN, H) f32
    xm_c = xm.astype(wq_ref.dtype)                       # cast for MXU

    q_ref[0] = (jnp.dot(xm_c, wq_ref[...], preferred_element_type=jnp.float32)
                + bq_ref[...]).astype(q_ref.dtype)
    k_ref[0] = (jnp.dot(xm_c, wk_ref[...], preferred_element_type=jnp.float32)
                + bk_ref[...]).astype(k_ref.dtype)
    v_ref[0] = (jnp.dot(xm_c, wv_ref[...], preferred_element_type=jnp.float32)
                + bv_ref[...]).astype(v_ref.dtype)


# ---------------------------------------------------------------------------
# 3) Flash attention (online softmax), grid = (B*heads, q-tiles, kv-tiles).
# ---------------------------------------------------------------------------
def _flash_attn_kernel(q_ref, k_ref, v_ref, o_ref, m_sc, l_sc, acc_sc, *, scale):
    ki = pl.program_id(2)

    @pl.when(ki == 0)
    def _():
        m_sc[...] = jnp.full(m_sc.shape, -jnp.inf, m_sc.dtype)
        l_sc[...] = jnp.zeros(l_sc.shape, l_sc.dtype)
        acc_sc[...] = jnp.zeros(acc_sc.shape, acc_sc.dtype)

    q = q_ref[0]                                         # (TNQ, hd)
    k = k_ref[0]                                         # (TNK, hd)
    v = v_ref[0]                                         # (TNK, hd)

    s = jax.lax.dot_general(q, k, (((1,), (1,)), ((), ())),
                            preferred_element_type=jnp.float32) * scale
    m_prev = m_sc[...]
    m_new = jnp.maximum(m_prev, s.max(axis=-1, keepdims=True))
    alpha = jnp.exp(m_prev - m_new)
    p = jnp.exp(s - m_new)
    l_sc[...] = alpha * l_sc[...] + p.sum(axis=-1, keepdims=True)
    acc_sc[...] = alpha * acc_sc[...] + jnp.dot(
        p.astype(v.dtype), v, preferred_element_type=jnp.float32)
    m_sc[...] = m_new

    @pl.when(ki == pl.num_programs(2) - 1)
    def _():
        o_ref[0] = (acc_sc[...] / l_sc[...]).astype(o_ref.dtype)


# ---------------------------------------------------------------------------
# 4) Output projection + gate + residual (token-tiled).
# ---------------------------------------------------------------------------
def _proj_residual_kernel(x_ref, a_ref, mod_ref, w_ref, b_ref, o_ref):
    x = x_ref[0]                                         # (TN, H) f32 residual
    a = a_ref[0].astype(w_ref.dtype)                     # (TN, H) attention out
    gate = mod_ref[0][2:3, :]                            # gate_msa (1, H) f32
    y = (jnp.dot(a, w_ref[...], preferred_element_type=jnp.float32)
         + b_ref[...])
    o_ref[0] = (x + gate * y).astype(o_ref.dtype)


# ---------------------------------------------------------------------------
# 5) MLP branch: LN + modulate + fc1 + GELU(tanh) + fc2 + gate + residual.
#    Grid (B, token-tiles, mlp-hidden-tiles); hidden axis is a reduction.
#    mod_ref rows: [shift_mlp, scale_mlp, gate_mlp]
# ---------------------------------------------------------------------------
def _mlp_kernel(x_ref, mod_ref, w1_ref, b1_ref, w2_ref, b2_ref, o_ref,
                xmod_sc, acc_sc):
    m = pl.program_id(2)

    @pl.when(m == 0)
    def _():
        x = x_ref[0]
        mod = mod_ref[0]
        shift = mod[0:1, :]
        scale = mod[1:2, :]
        mean = jnp.mean(x, axis=-1, keepdims=True)
        var = jnp.mean((x - mean) * (x - mean), axis=-1, keepdims=True)
        xn = (x - mean) * jax.lax.rsqrt(var + 1e-6)
        xmod_sc[...] = (xn * (1.0 + scale) + shift).astype(xmod_sc.dtype)
        acc_sc[...] = jnp.zeros(acc_sc.shape, acc_sc.dtype)

    xm = xmod_sc[...]
    h = (jnp.dot(xm, w1_ref[...], preferred_element_type=jnp.float32)
         + b1_ref[...])
    h = jax.nn.gelu(h, approximate=True)                 # GELU(tanh) in f32
    acc_sc[...] += jnp.dot(h.astype(w2_ref.dtype), w2_ref[...],
                           preferred_element_type=jnp.float32)

    @pl.when(m == pl.num_programs(2) - 1)
    def _():
        x = x_ref[0]
        gate = mod_ref[0][2:3, :]                        # gate_mlp (1, H)
        y = acc_sc[...] + b2_ref[...]
        o_ref[0] = (x + gate * y).astype(o_ref.dtype)


# ---------------------------------------------------------------------------
# Wrapper
# ---------------------------------------------------------------------------
def dit_block(x, c, params, num_heads, *, matmul_dtype=jnp.float32,
              token_tile=None, mlp_hidden_tile=None,
              vmem_limit_bytes=_VMEM_LIMIT):
    """DiTBlock forward (cross_attn=0).  x: (B,N,H), c: (B,H) -> (B,N,H)."""
    B, N, H = x.shape
    nh = num_heads
    assert H % nh == 0
    hd = H // nh
    Mh = params["w_fc1"].shape[1]

    TN = token_tile or _pick_tile(N, 256, 8)            # token tile (LN/matmul)
    TM = mlp_hidden_tile or _pick_tile(Mh, 512, 128)    # mlp hidden tile
    TNQ = _pick_tile(N, 256, 8)                         # flash q tile
    TNK = _pick_tile(N, 512, 8)                         # flash kv tile

    cp1 = pltpu.CompilerParams(dimension_semantics=("arbitrary",),
                               vmem_limit_bytes=vmem_limit_bytes)
    cp2 = pltpu.CompilerParams(dimension_semantics=("parallel", "parallel"),
                               vmem_limit_bytes=vmem_limit_bytes)
    cp3 = pltpu.CompilerParams(
        dimension_semantics=("parallel", "parallel", "arbitrary"),
        vmem_limit_bytes=vmem_limit_bytes)

    # Split / cast weights (matmul operands) once in the wrapper; biases f32.
    wq = params["w_qkv"][:, :H].astype(matmul_dtype)
    wk = params["w_qkv"][:, H:2 * H].astype(matmul_dtype)
    wv = params["w_qkv"][:, 2 * H:].astype(matmul_dtype)
    bq = params["b_qkv"][:H].reshape(1, H).astype(jnp.float32)
    bk = params["b_qkv"][H:2 * H].reshape(1, H).astype(jnp.float32)
    bv = params["b_qkv"][2 * H:].reshape(1, H).astype(jnp.float32)
    w_proj = params["w_proj"].astype(matmul_dtype)
    b_proj = params["b_proj"].reshape(1, H).astype(jnp.float32)
    w_fc1 = params["w_fc1"].astype(matmul_dtype)
    b_fc1 = params["b_fc1"].reshape(1, Mh).astype(jnp.float32)
    w_fc2 = params["w_fc2"].astype(matmul_dtype)
    b_fc2 = params["b_fc2"].reshape(1, H).astype(jnp.float32)

    # ---- 1) adaLN modulation (kept f32; tiny batched matmul, one grid step).
    ada = pl.pallas_call(
        _adaln_kernel,
        out_shape=jax.ShapeDtypeStruct((B, 6 * H), jnp.float32),
        grid_spec=pltpu.PrefetchScalarGridSpec(
            num_scalar_prefetch=0, grid=(1,),
            in_specs=[
                pl.BlockSpec((B, H), lambda i: (0, 0)),
                pl.BlockSpec((H, 6 * H), lambda i: (0, 0)),
                pl.BlockSpec((1, 6 * H), lambda i: (0, 0)),
            ],
            out_specs=pl.BlockSpec((B, 6 * H), lambda i: (0, 0)),
        ),
        compiler_params=cp1,
    )(c.astype(jnp.float32), params["w_ada"].astype(jnp.float32),
      params["b_ada"].reshape(1, 6 * H).astype(jnp.float32))

    ada = ada.reshape(B, 6, H)
    mod_attn = ada[:, 0:3, :]   # [shift_msa, scale_msa, gate_msa]
    mod_mlp = ada[:, 3:6, :]    # [shift_mlp, scale_mlp, gate_mlp]

    # ---- 2) LN + modulate + QKV projections (token-tiled).
    q, k, v = pl.pallas_call(
        _qkv_kernel,
        out_shape=(jax.ShapeDtypeStruct((B, N, H), matmul_dtype),
                   jax.ShapeDtypeStruct((B, N, H), matmul_dtype),
                   jax.ShapeDtypeStruct((B, N, H), matmul_dtype)),
        grid_spec=pltpu.PrefetchScalarGridSpec(
            num_scalar_prefetch=0, grid=(B, N // TN),
            in_specs=[
                pl.BlockSpec((1, TN, H), lambda b, i: (b, i, 0)),   # x
                pl.BlockSpec((1, 3, H), lambda b, i: (b, 0, 0)),    # mod_attn
                pl.BlockSpec((H, H), lambda b, i: (0, 0)),          # wq
                pl.BlockSpec((H, H), lambda b, i: (0, 0)),          # wk
                pl.BlockSpec((H, H), lambda b, i: (0, 0)),          # wv
                pl.BlockSpec((1, H), lambda b, i: (0, 0)),          # bq
                pl.BlockSpec((1, H), lambda b, i: (0, 0)),          # bk
                pl.BlockSpec((1, H), lambda b, i: (0, 0)),          # bv
            ],
            out_specs=[
                pl.BlockSpec((1, TN, H), lambda b, i: (b, i, 0)),
                pl.BlockSpec((1, TN, H), lambda b, i: (b, i, 0)),
                pl.BlockSpec((1, TN, H), lambda b, i: (b, i, 0)),
            ],
        ),
        compiler_params=cp2,
    )(x, mod_attn, wq, wk, wv, bq, bk, bv)

    # Head split in the wrapper (layout plumbing only): (B,N,H) -> (B*nh,N,hd)
    def split_heads(t):
        return t.reshape(B, N, nh, hd).transpose(0, 2, 1, 3).reshape(B * nh, N, hd)

    def merge_heads(t):
        return t.reshape(B, nh, N, hd).transpose(0, 2, 1, 3).reshape(B, N, H)

    qh, kh, vh = split_heads(q), split_heads(k), split_heads(v)

    # ---- 3) Flash attention over (batch*heads, q-tiles, kv-tiles).
    attn_h = pl.pallas_call(
        functools.partial(_flash_attn_kernel, scale=float(hd) ** -0.5),
        out_shape=jax.ShapeDtypeStruct((B * nh, N, hd), matmul_dtype),
        grid_spec=pltpu.PrefetchScalarGridSpec(
            num_scalar_prefetch=0, grid=(B * nh, N // TNQ, N // TNK),
            in_specs=[
                pl.BlockSpec((1, TNQ, hd), lambda h, qi, ki: (h, qi, 0)),
                pl.BlockSpec((1, TNK, hd), lambda h, qi, ki: (h, ki, 0)),
                pl.BlockSpec((1, TNK, hd), lambda h, qi, ki: (h, ki, 0)),
            ],
            out_specs=pl.BlockSpec((1, TNQ, hd), lambda h, qi, ki: (h, qi, 0)),
            scratch_shapes=[
                pltpu.VMEM((TNQ, 1), jnp.float32),   # running max
                pltpu.VMEM((TNQ, 1), jnp.float32),   # running denom
                pltpu.VMEM((TNQ, hd), jnp.float32),  # accumulator
            ],
        ),
        compiler_params=cp3,
    )(qh, kh, vh)

    attn_out = merge_heads(attn_h)

    # ---- 4) Output projection + gate_msa + residual (token-tiled).
    x_attn = pl.pallas_call(
        _proj_residual_kernel,
        out_shape=jax.ShapeDtypeStruct((B, N, H), x.dtype),
        grid_spec=pltpu.PrefetchScalarGridSpec(
            num_scalar_prefetch=0, grid=(B, N // TN),
            in_specs=[
                pl.BlockSpec((1, TN, H), lambda b, i: (b, i, 0)),   # x residual
                pl.BlockSpec((1, TN, H), lambda b, i: (b, i, 0)),   # attn out
                pl.BlockSpec((1, 3, H), lambda b, i: (b, 0, 0)),    # mod_attn
                pl.BlockSpec((H, H), lambda b, i: (0, 0)),          # w_proj
                pl.BlockSpec((1, H), lambda b, i: (0, 0)),          # b_proj
            ],
            out_specs=pl.BlockSpec((1, TN, H), lambda b, i: (b, i, 0)),
        ),
        compiler_params=cp2,
    )(x, attn_out, mod_attn, w_proj, b_proj)

    # ---- 5) MLP branch (token-tiled, mlp-hidden reduction axis).
    out = pl.pallas_call(
        _mlp_kernel,
        out_shape=jax.ShapeDtypeStruct((B, N, H), x.dtype),
        grid_spec=pltpu.PrefetchScalarGridSpec(
            num_scalar_prefetch=0, grid=(B, N // TN, Mh // TM),
            in_specs=[
                pl.BlockSpec((1, TN, H), lambda b, i, m: (b, i, 0)),  # x_attn
                pl.BlockSpec((1, 3, H), lambda b, i, m: (b, 0, 0)),   # mod_mlp
                pl.BlockSpec((H, TM), lambda b, i, m: (0, m)),        # w_fc1
                pl.BlockSpec((1, TM), lambda b, i, m: (0, m)),        # b_fc1
                pl.BlockSpec((TM, H), lambda b, i, m: (m, 0)),        # w_fc2
                pl.BlockSpec((1, H), lambda b, i, m: (0, 0)),         # b_fc2
            ],
            out_specs=pl.BlockSpec((1, TN, H), lambda b, i, m: (b, i, 0)),
            scratch_shapes=[
                pltpu.VMEM((TN, H), matmul_dtype),   # cached modulated x
                pltpu.VMEM((TN, H), jnp.float32),    # fc2 accumulator
            ],
        ),
        compiler_params=cp3,
    )(x_attn, mod_mlp, w_fc1, b_fc1, w_fc2, b_fc2)

    return out


# ---------------------------------------------------------------------------
# Pure-JAX reference mirroring the PyTorch DiTBlock (cross_attn=0, eval mode).
# ---------------------------------------------------------------------------
def reference_dit_block(x, c, params, num_heads):
    P = jax.lax.Precision.HIGHEST
    B, N, H = x.shape
    hd = H // num_heads

    ada = jnp.dot(jax.nn.silu(c), params["w_ada"], precision=P) + params["b_ada"]
    (shift_msa, scale_msa, gate_msa,
     shift_mlp, scale_mlp, gate_mlp) = jnp.split(ada, 6, axis=1)

    def ln(t):
        mu = jnp.mean(t, axis=-1, keepdims=True)
        var = jnp.mean((t - mu) ** 2, axis=-1, keepdims=True)
        return (t - mu) * jax.lax.rsqrt(var + 1e-6)

    def modulate(t, sh, sc):
        return t * (1.0 + sc[:, None, :]) + sh[:, None, :]

    # Self-attention branch.
    xm = modulate(ln(x), shift_msa, scale_msa)
    qkv = jnp.dot(xm, params["w_qkv"], precision=P) + params["b_qkv"]
    q, k, v = jnp.split(qkv, 3, axis=-1)

    def heads(t):
        return t.reshape(B, N, num_heads, hd).transpose(0, 2, 1, 3)

    q, k, v = heads(q), heads(k), heads(v)
    attn = jnp.einsum("bhqd,bhkd->bhqk", q * hd ** -0.5, k, precision=P)
    attn = jax.nn.softmax(attn, axis=-1)
    o = jnp.einsum("bhqk,bhkd->bhqd", attn, v, precision=P)
    o = o.transpose(0, 2, 1, 3).reshape(B, N, H)
    o = jnp.dot(o, params["w_proj"], precision=P) + params["b_proj"]
    x = x + gate_msa[:, None, :] * o

    # MLP branch.
    xm2 = modulate(ln(x), shift_mlp, scale_mlp)
    h = jax.nn.gelu(jnp.dot(xm2, params["w_fc1"], precision=P) + params["b_fc1"],
                    approximate=True)
    y = jnp.dot(h, params["w_fc2"], precision=P) + params["b_fc2"]
    return x + gate_mlp[:, None, :] * y


if __name__ == "__main__":
    # Small shapes consistent with the module:
    #   hidden_size=32, num_heads=4 (head_dim=8), mlp_ratio=4 -> mlp_hidden=128
    #   batch=2, tokens(seq)=8
    B, N, H = 2, 8, 32
    num_heads = 4
    Mh = int(H * 4.0)

    key = jax.random.PRNGKey(0)
    ks = jax.random.split(key, 12)
    x = jax.random.normal(ks[0], (B, N, H), dtype=jnp.float32)
    c = jax.random.normal(ks[1], (B, H), dtype=jnp.float32)

    def wgen(k, shape):
        return jax.random.normal(k, shape, dtype=jnp.float32) * 0.02

    params = dict(
        w_ada=wgen(ks[2], (H, 6 * H)), b_ada=wgen(ks[3], (6 * H,)),
        w_qkv=wgen(ks[4], (H, 3 * H)), b_qkv=wgen(ks[5], (3 * H,)),
        w_proj=wgen(ks[6], (H, H)),    b_proj=wgen(ks[7], (H,)),
        w_fc1=wgen(ks[8], (H, Mh)),    b_fc1=wgen(ks[9], (Mh,)),
        w_fc2=wgen(ks[10], (Mh, H)),   b_fc2=wgen(ks[11], (H,)),
    )

    ref = reference_dit_block(x, c, params, num_heads)

    # f32 matmul path (tight check).
    out_f32 = jax.block_until_ready(
        dit_block(x, c, params, num_heads, matmul_dtype=jnp.float32))
    assert out_f32.shape == (B, N, H)
    assert jnp.allclose(out_f32, ref, atol=1e-4, rtol=1e-4), "f32 mismatch"

    # bf16 matmul path (perf mode from the review; loose check).
    out_bf16 = jax.block_until_ready(
        dit_block(x, c, params, num_heads, matmul_dtype=jnp.bfloat16))
    assert out_bf16.shape == (B, N, H)
    assert jnp.allclose(out_bf16, ref, atol=5e-2, rtol=5e-2), "bf16 mismatch"

    print("KERNEL_OK")
</pallas_src>

<mosaic_0001>
module attributes {stable_mosaic.version = 11 : i64} {
  func.func @_adaln_kernel(%arg0: i32, %arg1: memref<2x32xf32, #tpu.memory_space<vmem>>, %arg2: memref<32x192xf32, #tpu.memory_space<vmem>>, %arg3: memref<1x192xf32, #tpu.memory_space<vmem>>, %arg4: memref<2x192xf32, #tpu.memory_space<vmem>>) attributes {dimension_semantics = [#tpu.dimension_semantics<arbitrary>], iteration_bounds = array<i64: 1>, scalar_prefetch = 0 : i64, scratch_operands = 0 : i64, tpu.core_type = #tpu.core_type<tc>, window_params = [{pipeline_mode = #tpu.pipeline_mode<synchronous>, transform_indices = @transform_0, window_bounds = array<i64: 2, 32>}, {pipeline_mode = #tpu.pipeline_mode<synchronous>, transform_indices = @transform_1, window_bounds = array<i64: 32, 192>}, {pipeline_mode = #tpu.pipeline_mode<synchronous>, transform_indices = @transform_2, window_bounds = array<i64: 1, 192>}, {pipeline_mode = #tpu.pipeline_mode<synchronous>, transform_indices = @transform_3, window_bounds = array<i64: 2, 192>}]} {
    %c0 = arith.constant 0 : index
    %c0_0 = arith.constant 0 : index
    %0 = vector.load %arg1[%c0, %c0_0] : memref<2x32xf32, #tpu.memory_space<vmem>>, vector<2x32xf32>
    %1 = arith.negf %0 : vector<2x32xf32>
    %2 = math.exp %1 : vector<2x32xf32>
    %cst = arith.constant 1.000000e+00 : f32
    %3 = vector.broadcast %cst : f32 to vector<2x32xf32>
    %4 = arith.addf %3, %2 : vector<2x32xf32>
    %5 = arith.divf %3, %4 : vector<2x32xf32>
    %6 = arith.mulf %0, %5 : vector<2x32xf32>
    %c0_1 = arith.constant 0 : index
    %c0_2 = arith.constant 0 : index
    %7 = vector.load %arg2[%c0_1, %c0_2] : memref<32x192xf32, #tpu.memory_space<vmem>>, vector<32x192xf32>
    %cst_3 = arith.constant dense<0.000000e+00> : vector<2x192xf32>
    %8 = tpu.matmul %6, %7, %cst_3 {dimension_numbers = #tpu.dot_dimension_numbers<[1], [0], [0], [1], [0, 0, 1, 1], [], []>} : vector<2x32xf32>, vector<32x192xf32>, vector<2x192xf32> -> vector<2x192xf32>
    %c0_4 = arith.constant 0 : index
    %c0_5 = arith.constant 0 : index
    %9 = vector.load %arg3[%c0_4, %c0_5] : memref<1x192xf32, #tpu.memory_space<vmem>>, vector<1x192xf32>
    %10 = vector.broadcast %9 : vector<1x192xf32> to vector<2x192xf32>
    %11 = arith.addf %8, %10 : vector<2x192xf32>
    %c0_6 = arith.constant 0 : index
    %c0_7 = arith.constant 0 : index
    %12 = vector.load %arg4[%c0_6, %c0_7] : memref<2x192xf32, #tpu.memory_space<vmem>>, vector<2x192xf32>
    tpu.vector_store %arg4[%c0_6, %c0_7], %11 {strides = array<i32>} : memref<2x192xf32, #tpu.memory_space<vmem>>, vector<2x192xf32>,
    return
  }
  func.func @transform_0(%arg0: i32) -> (i32, i32) {
    %c0_i32 = arith.constant 0 : i32
    %c0_i32_0 = arith.constant 0 : i32
    %c0_i32_1 = arith.constant 0 : i32
    return %c0_i32, %c0_i32_0 : i32, i32
  }
  func.func @transform_1(%arg0: i32) -> (i32, i32) {
    %c0_i32 = arith.constant 0 : i32
    %c0_i32_0 = arith.constant 0 : i32
    %c0_i32_1 = arith.constant 0 : i32
    return %c0_i32, %c0_i32_0 : i32, i32
  }
  func.func @transform_2(%arg0: i32) -> (i32, i32) {
    %c0_i32 = arith.constant 0 : i32
    %c0_i32_0 = arith.constant 0 : i32
    %c0_i32_1 = arith.constant 0 : i32
    return %c0_i32, %c0_i32_0 : i32, i32
  }
  func.func @transform_3(%arg0: i32) -> (i32, i32) {
    %c0_i32 = arith.constant 0 : i32
    %c0_i32_0 = arith.constant 0 : i32
    %c0_i32_1 = arith.constant 0 : i32
    return %c0_i32, %c0_i32_0 : i32, i32
  }
}

</mosaic_0001>

<llo_original>
// kernel: tpu_custom_call.1
$region0: #{tpu_custom_call.1}
  #allocation0 [shape = 'u32[]', space=smem, size = 0x4, offset = 0x4, fixed_abs, tag = 'smem constant byte address 0x4 - core index']
  #allocation1 [shape = 'u32[144,128]{1,0:T(1,128)}', space=vmem, size = 0x12000, scoped, tag = 'internal scratch']
  %s0 = inlined_call_operand.hbm [shape: f32[2,32], index: 0, kind: input, shape index: {}]
  %s1 = inlined_call_operand.hbm [shape: f32[32,192], index: 1, kind: input, shape index: {}]
  %s2 = inlined_call_operand.vmem [shape: f32[1,192], index: 2, kind: input, shape index: {}]
  %s3 = inlined_call_operand.hbm [shape: f32[2,192], index: 3, kind: output, shape index: {}]
  %s4 = sld [smem:[#allocation0]]
  $region30: #{tpu_custom_call.1} parent=0
    _
  %s6 = ssub.s32 1, %s4
  %s7 = scalar_select 0, %s6, %s4
  $region1: #{tpu_custom_call.1} parent=0
    #allocation2 [shape = 'u8[1024]{0}', space=vmem, size = 0x400, scoped, tag = 'input window, operand 0, single buffered']
    #allocation3 [shape = 's32[1]{0}', space=sflag, size = 0x4, scoped, tag = 'scoped memory for tpu_custom_call.1']
    #allocation4 [shape = 's32[1]{0}', space=sflag, size = 0x4, scoped, tag = 'scoped memory for tpu_custom_call.1']
    #allocation5 [shape = 'u8[32768]{0}', space=vmem, size = 0x8000, scoped, tag = 'input window, operand 1, single buffered']
    #allocation6 [shape = 's32[1]{0}', space=sflag, size = 0x4, scoped, tag = 'scoped memory for tpu_custom_call.1']
    #allocation7 [shape = 'u8[2048]{0}', space=vmem, size = 0x800, scoped, tag = 'output window, operand 0, single buffered']
    %8 = vsyncpa [#allocation3], 0
    %9 = vsyncpa [#allocation6], 0
    %10 = vsyncpa [#allocation4], 0
    // Predicated region
    $region2: #{tpu_custom_call.1} parent=1 // pred_check
      _
    $region3: #{tpu_custom_call.1} parent=1 // pred_check_branch
      %12 = sbr.rel (0) target = $region5
    $region4: #{tpu_custom_call.1} parent=1 // pred_region
      %s14 = ssub.s32 32, 32
      %15 = vsyncadd [#allocation3], %s14
      %s17 = sshll.u32 [#allocation2], 4
      %s18 = int_to_ptr.vmem [resolvable:$true] %s17
      %20 = dma.hbm_to_vmem [thread:$0]  %s0, 32, %s18, [#allocation3]
    $region5: #{tpu_custom_call.1} parent=1 // pred_fallthru
      _
    // Predicated region
    $region6: #{tpu_custom_call.1} parent=1 // pred_check
      _
    $region7: #{tpu_custom_call.1} parent=1 // pred_check_branch
      %22 = sbr.rel (0) target = $region9
    $region8: #{tpu_custom_call.1} parent=1 // pred_region
      %s24 = ssub.s32 1024, 1024
      %25 = vsyncadd [#allocation6], %s24
      %s26 = sshll.u32 [#allocation5], 4
      %s27 = int_to_ptr.vmem [resolvable:$true] %s26
      %32 = dma.hbm_to_vmem [thread:$0]  %s1, 1024, %s27, [#allocation6], 256, 256, 16
    $region9: #{tpu_custom_call.1} parent=1 // pred_fallthru
      _
    // Predicated region
    $region10: #{tpu_custom_call.1} parent=1 // pred_check
      _
    $region11: #{tpu_custom_call.1} parent=1 // pred_check_branch
      %34 = sbr.rel (0) target = $region13
    $region12: #{tpu_custom_call.1} parent=1 // pred_region
      _
    $region13: #{tpu_custom_call.1} parent=1 // pred_fallthru
      _
    // Predicated region
    $region14: #{tpu_custom_call.1} parent=1 // pred_check
      _
    $region15: #{tpu_custom_call.1} parent=1 // pred_check_branch
      %36 = sbr.rel (0) target = $region17
    $region16: #{tpu_custom_call.1} parent=1 // pred_region
      %37 = dma.done [#allocation3], 32
    $region17: #{tpu_custom_call.1} parent=1 // pred_fallthru
      _
    // Predicated region
    $region18: #{tpu_custom_call.1} parent=1 // pred_check
      _
    $region19: #{tpu_custom_call.1} parent=1 // pred_check_branch
      %39 = sbr.rel (0) target = $region21
    $region20: #{tpu_custom_call.1} parent=1 // pred_region
      %40 = dma.done [#allocation6], 1024
    $region21: #{tpu_custom_call.1} parent=1 // pred_fallthru
      _
    %v41 = vld [vmem:[#allocation2] sm:$0x3]
    %v42 = vxor.u32 %v41, 2147483648
    %v43 = vmul.f32 %v42, 1.442695
    %v44 = vpow.pop %v43
    %v45 = vadd.f32 %v44, 1.0
    %v46 = vrcp.pop %v45
    %v47 = vmul.f32 1.0, %v46
    %v48 = vmul.f32 %v41, %v47
    %v49 = vld [vmem:[#allocation5] sm:$0xff]
    %v50 = vld [vmem:[#allocation5 + $0x8] sm:$0xff]
    %v51 = vld [vmem:[#allocation5 + $0x10] sm:$0xff]
    %v52 = vld [vmem:[#allocation5 + $0x18] sm:$0xff]
    %v53 = vld [vmem:[#allocation5 + $0x20] sm:$0xff]
    %v54 = vld [vmem:[#allocation5 + $0x28] sm:$0xff]
    %v55 = vld [vmem:[#allocation5 + $0x30] sm:$0xff]
    %v56 = vld [vmem:[#allocation5 + $0x38] sm:$0xff]
    %v57 = vld [vmem:[%s2] sm:$0x3]
    %v59 = vlaneseq
    %v60 = vshrl.u32 %v59, 7
    %v61 = vsub.s32 0, %v60
    %v62 = vrot.slane %v57, %v61
    %v63 = vlaneseq
    %v64 = vshrl.u32 %v63, 7
    %v65 = vsub.s32 1, %v64
    %v66 = vrot.slane %v57, %v65
    %vm69 = vcmask 261120
    %v71 = vsel %vm69, %v48, 0
    %73 = vmatprep.subr.mxu0 %v50
    %74 = vmatpush1.msra.mxu0 %v49
    %75 = vmatprep.subr.mxu0 %v52
    %76 = vmatpush1.msra.mxu0 %v51
    %77 = vmatprep.subr.mxu0 %v54
    %78 = vmatpush1.msra.mxu0 %v53
    %79 = vmatprep.subr.mxu0 %v56
    %80 = vmatpush1.msra.mxu0 %v55
    %81 = vmatprep.subr.mxu0 0.0
    %82 = vmatpush1.msra.mxu0 0.0
    %83 = vmatprep.subr.mxu0 0.0
    %84 = vmatpush1.msra.mxu0 0.0
    %85 = vmatprep.subr.mxu0 0.0
    %86 = vmatpush1.msra.mxu0 0.0
    %87 = vmatprep.subr.mxu0 0.0
    %88 = vmatpush1.msra.mxu0 0.0
    %89 = vmatprep.subr.mxu0 0.0
    %90 = vmatpush1.msra.mxu0 0.0
    %91 = vmatprep.subr.mxu0 0.0
    %92 = vmatpush1.msra.mxu0 0.0
    %93 = vmatprep.subr.mxu0 0.0
    %94 = vmatpush1.msra.mxu0 0.0
    %95 = vmatprep.subr.mxu0 0.0
    %96 = vmatpush1.msra.mxu0 0.0
    %97 = vmatprep.subr.mxu0 0.0
    %98 = vmatpush1.msra.mxu0 0.0
    %99 = vmatprep.subr.mxu0 0.0
    %100 = vmatpush1.msra.mxu0 0.0
    %101 = vmatprep.subr.mxu0 0.0
    %102 = vmatpush1.msra.mxu0 0.0
    %103 = vmatprep.subr.mxu0 0.0
    %104 = vmatpush1.msra.mxu0 0.0
    %105 = vmatprep.subr.mxu0 0.0
    %106 = vmatpush1.msra.mxu0 0.0
    %107 = vmatprep.subr.mxu0 0.0
    %108 = vmatpush1.msra.mxu0 0.0
    %109 = vmatprep.subr.mxu0 0.0
    %110 = vmatpush1.msra.mxu0 0.0
    %111 = vmatprep.subr.mxu0 0.0
    %112 = vmatpush1.msra.mxu0 0.0
    %113 = vmatprep.subr.mxu0 0.0
    %114 = vmatpush1.msra.mxu0 0.0
    %115 = vmatprep.subr.mxu0 0.0
    %116 = vmatpush1.msra.mxu0 0.0
    %117 = vmatprep.subr.mxu0 0.0
    %118 = vmatpush1.msra.mxu0 0.0
    %119 = vmatprep.subr.mxu0 0.0
    %120 = vmatpush1.msra.mxu0 0.0
    %121 = vmatprep.subr.mxu0 0.0
    %122 = vmatpush1.msra.mxu0 0.0
    %123 = vmatprep.subr.mxu0 0.0
    %124 = vmatpush1.msra.mxu0 0.0
    %125 = vmatprep.subr.mxu0 0.0
    %126 = vmatpush1.msra.mxu0 0.0
    %127 = vmatprep.subr.mxu0 0.0
    %128 = vmatpush1.msra.mxu0 0.0
    %129 = vmatprep.subr.mxu0 0.0
    %130 = vmatpush1.msra.mxu0 0.0
    %131 = vmatprep.subr.mxu0 0.0
    %132 = vmatpush1.msra.mxu0 0.0
    %133 = vmatprep.subr.mxu0 0.0
    %134 = vmatpush1.msra.mxu0 0.0
    %135 = vmatprep.subr.mxu0 0.0
    %136 = vmatpush1.msra.mxu0 0.0
    %137 = vmatprep.mubr.f32.mxu0 0.0
    %138 = vmatmul.mubr.f32.gmra.mrb[0].mxu0 %v71
    %v139 = vpop.f32.mrb[0].mxu0
    %v140 = vadd.f32 %v62, %v139
    %v141 = vpop.f32.mrb[0].mxu0
    %v142 = vadd.f32 %v66, %v141
    %143 = vdwg.mxu0
    %v146 = vcombine.low %v140, %v142
    %v148 = vunpack.c.l.s4 1983009808
    %v149 = vunpack.c.0.s8 %v148
    %v150 = vlaneseq
    %v151 = vshrl.u32 %v150, 7
    %v152 = vsub.s32 %v149, %v151
    %v153 = vrot.slane %v146, %v152
    %vm155 = vcmask 1041408
    %vm156 = vcmask 519170
    %vm157 = vmor %vm156, %vm155
    %158 = vst.msk [vmem:[#allocation7] sm:$0xf] %vm157, %v153
    // Predicated region
    $region22: #{tpu_custom_call.1} parent=1 // pred_check
      _
    $region23: #{tpu_custom_call.1} parent=1 // pred_check_branch
      %160 = sbr.rel (0) target = $region25
    $region24: #{tpu_custom_call.1} parent=1 // pred_region
      %s162 = ssub.s32 64, 64
      %163 = vsyncadd [#allocation4], %s162
      %s165 = sshll.u32 [#allocation7], 4
      %s166 = int_to_ptr.vmem [resolvable:$true] %s165
      %168 = dma.vmem_to_hbm [thread:$0]  %s166, 64, %s3, [#allocation4]
    $region25: #{tpu_custom_call.1} parent=1 // pred_fallthru
      _
    // Predicated region
    $region26: #{tpu_custom_call.1} parent=1 // pred_check
      _
    $region27: #{tpu_custom_call.1} parent=1 // pred_check_branch
      %170 = sbr.rel (0) target = $region29
    $region28: #{tpu_custom_call.1} parent=1 // pred_region
      %171 = dma.done [#allocation4], 64
    $region29: #{tpu_custom_call.1} parent=1 // pred_fallthru
      _
    %172 = vsyncpa [#allocation3], 1
    %173 = vsyncpa [#allocation6], 1
    %174 = vsyncpa [#allocation4], 1

</llo_original>
